<compile_context>
chip_gen: v5e
topology: v5e:2x2
jax: 0.10.0
libtpu: 0.0.40
codegen_flags: <defaults>
</compile_context>

<pallas_src>
import jax
import jax.numpy as jnp
import numpy as np
from jax.experimental import pallas as pl
from jax.experimental.pallas import tpu as pltpu

EPS = 1e-5          # PyTorch BatchNorm2d default eps
LANE = 128          # lane width: channel axis padded to this (lane-dense stores)
SUB = 8             # sublane multiple for contraction-dim padding
TM_TARGET = 512     # pixel rows per tile (~85% HBM roofline per tile sweep)
MXU_DTYPE = jnp.bfloat16   # MXU operand dtype; accumulation & BN math stay f32


def _ceil_to(x, m):
    return (x + m - 1) // m * m


# ---------------------------------------------------------------------------
# Pallas kernels
# ---------------------------------------------------------------------------
def _matmul_stats_kernel(p_ref, w_ref, y_ref, sum_ref, ssq_ref):
    """y_tile = p_tile @ w ; accumulate per-channel sum / sum-of-squares
    across the M (pixel) grid axis into resident (1, Cp) outputs."""
    @pl.when(pl.program_id(0) == 0)
    def _():
        sum_ref[...] = jnp.zeros_like(sum_ref)
        ssq_ref[...] = jnp.zeros_like(ssq_ref)

    y = jnp.dot(p_ref[...], w_ref[...], preferred_element_type=jnp.float32)
    y_ref[...] = y
    sum_ref[...] += jnp.sum(y, axis=0, keepdims=True)
    ssq_ref[...] += jnp.sum(y * y, axis=0, keepdims=True)


def _matmul_proj_stats_kernel(p_ref, w_ref, xs_ref, ws_ref,
                              y_ref, ys_ref, sum_ref, ssq_ref,
                              sums_ref, ssqs_ref):
    """conv2 matmul + 1x1 projection-shortcut matmul, BN stats for both."""
    @pl.when(pl.program_id(0) == 0)
    def _():
        sum_ref[...] = jnp.zeros_like(sum_ref)
        ssq_ref[...] = jnp.zeros_like(ssq_ref)
        sums_ref[...] = jnp.zeros_like(sums_ref)
        ssqs_ref[...] = jnp.zeros_like(ssqs_ref)

    y = jnp.dot(p_ref[...], w_ref[...], preferred_element_type=jnp.float32)
    ys = jnp.dot(xs_ref[...], ws_ref[...], preferred_element_type=jnp.float32)
    y_ref[...] = y
    ys_ref[...] = ys
    sum_ref[...] += jnp.sum(y, axis=0, keepdims=True)
    ssq_ref[...] += jnp.sum(y * y, axis=0, keepdims=True)
    sums_ref[...] += jnp.sum(ys, axis=0, keepdims=True)
    ssqs_ref[...] += jnp.sum(ys * ys, axis=0, keepdims=True)


def _bn_relu_kernel(y_ref, sc_ref, sh_ref, o_ref):
    o_ref[...] = jnp.maximum(y_ref[...] * sc_ref[...] + sh_ref[...], 0.0)


def _bn_add_bn_relu_kernel(y_ref, ys_ref, sc_ref, sh_ref, scs_ref, shs_ref,
                           o_ref):
    a = y_ref[...] * sc_ref[...] + sh_ref[...]
    b = ys_ref[...] * scs_ref[...] + shs_ref[...]
    o_ref[...] = jnp.maximum(a + b, 0.0)


def _bn_add_res_relu_kernel(y_ref, r_ref, sc_ref, sh_ref, o_ref):
    o_ref[...] = jnp.maximum(
        y_ref[...] * sc_ref[...] + sh_ref[...] + r_ref[...], 0.0)


# ---------------------------------------------------------------------------
# BlockSpec helpers + pallas_call wrappers
# ---------------------------------------------------------------------------
def _tile_block(tm, cols):          # streams over M
    return pl.BlockSpec((tm, cols), lambda i: (i, 0))


def _resident_block(rows, cols):    # stays resident across the grid
    return pl.BlockSpec((rows, cols), lambda i: (0, 0))


def _row_block(cols):               # (1, Cp) resident row (params / stats)
    return pl.BlockSpec((1, cols), lambda i: (0, 0))


def _conv_matmul_stats(p, w, tm):
    Mp, K = p.shape
    Cp = w.shape[1]
    y, s, q = pl.pallas_call(
        _matmul_stats_kernel,
        grid=(Mp // tm,),
        in_specs=[_tile_block(tm, K), _resident_block(K, Cp)],
        out_specs=[_tile_block(tm, Cp), _row_block(Cp), _row_block(Cp)],
        out_shape=[jax.ShapeDtypeStruct((Mp, Cp), jnp.float32),
                   jax.ShapeDtypeStruct((1, Cp), jnp.float32),
                   jax.ShapeDtypeStruct((1, Cp), jnp.float32)],
        compiler_params=pltpu.CompilerParams(
            dimension_semantics=("arbitrary",)),   # stats accumulate across M
    )(p, w)
    return y, s, q


def _conv_proj_matmul_stats(p, w, xs, ws, tm):
    Mp, K = p.shape
    Cp = w.shape[1]
    Ks = xs.shape[1]
    return pl.pallas_call(
        _matmul_proj_stats_kernel,
        grid=(Mp // tm,),
        in_specs=[_tile_block(tm, K), _resident_block(K, Cp),
                  _tile_block(tm, Ks), _resident_block(Ks, Cp)],
        out_specs=[_tile_block(tm, Cp), _tile_block(tm, Cp),
                   _row_block(Cp), _row_block(Cp),
                   _row_block(Cp), _row_block(Cp)],
        out_shape=[jax.ShapeDtypeStruct((Mp, Cp), jnp.float32),
                   jax.ShapeDtypeStruct((Mp, Cp), jnp.float32),
                   jax.ShapeDtypeStruct((1, Cp), jnp.float32),
                   jax.ShapeDtypeStruct((1, Cp), jnp.float32),
                   jax.ShapeDtypeStruct((1, Cp), jnp.float32),
                   jax.ShapeDtypeStruct((1, Cp), jnp.float32)],
        compiler_params=pltpu.CompilerParams(
            dimension_semantics=("arbitrary",)),
    )(p, w, xs, ws)


def _bn_relu_apply(y, scale, shift, tm):
    Mp, Cp = y.shape
    return pl.pallas_call(
        _bn_relu_kernel,
        grid=(Mp // tm,),
        in_specs=[_tile_block(tm, Cp), _row_block(Cp), _row_block(Cp)],
        out_specs=_tile_block(tm, Cp),
        out_shape=jax.ShapeDtypeStruct((Mp, Cp), jnp.float32),
        compiler_params=pltpu.CompilerParams(
            dimension_semantics=("parallel",)),
    )(y, scale, shift)


def _bn_add_bn_relu_apply(y, ys, sc, sh, scs, shs, tm):
    Mp, Cp = y.shape
    return pl.pallas_call(
        _bn_add_bn_relu_kernel,
        grid=(Mp // tm,),
        in_specs=[_tile_block(tm, Cp), _tile_block(tm, Cp),
                  _row_block(Cp), _row_block(Cp),
                  _row_block(Cp), _row_block(Cp)],
        out_specs=_tile_block(tm, Cp),
        out_shape=jax.ShapeDtypeStruct((Mp, Cp), jnp.float32),
        compiler_params=pltpu.CompilerParams(
            dimension_semantics=("parallel",)),
    )(y, ys, sc, sh, scs, shs)


def _bn_add_res_relu_apply(y, res, sc, sh, tm):
    Mp, Cp = y.shape
    return pl.pallas_call(
        _bn_add_res_relu_kernel,
        grid=(Mp // tm,),
        in_specs=[_tile_block(tm, Cp), _tile_block(tm, Cp),
                  _row_block(Cp), _row_block(Cp)],
        out_specs=_tile_block(tm, Cp),
        out_shape=jax.ShapeDtypeStruct((Mp, Cp), jnp.float32),
        compiler_params=pltpu.CompilerParams(
            dimension_semantics=("parallel",)),
    )(y, res, sc, sh)


# ---------------------------------------------------------------------------
# Glue: im2col, padding, BN finalize, parameters, wrapper
# ---------------------------------------------------------------------------
def _im2col(x_nhwc, ksize, stride, pad):
    N, H, W, C = x_nhwc.shape
    xp = jnp.pad(x_nhwc, ((0, 0), (pad, pad), (pad, pad), (0, 0)))
    Ho = (H + 2 * pad - ksize) // stride + 1
    Wo = (W + 2 * pad - ksize) // stride + 1
    taps = []
    for kh in range(ksize):
        for kw in range(ksize):
            taps.append(xp[:, kh:kh + stride * (Ho - 1) + 1:stride,
                            kw:kw + stride * (Wo - 1) + 1:stride, :])
    patches = jnp.stack(taps, axis=3)                 # (N, Ho, Wo, k*k, C)
    return patches.reshape(N * Ho * Wo, ksize * ksize * C), Ho, Wo


def _pad2d(a, rows, cols):
    r, c = a.shape
    return jnp.pad(a, ((0, rows - r), (0, cols - c)))


def _pad_row(v, cols):
    return jnp.pad(v.reshape(1, -1), ((0, 0), (0, cols - v.shape[0])))


def _bn_scale_shift(s, q, count, gamma_row, beta_row):
    """Finalize batch stats -> fused scale/shift rows ((1, Cp) JAX math;
    negligible next to the tiled kernels).  Padded channels end up 0."""
    mean = s / count
    var = q / count - mean * mean        # biased batch var (training-mode BN)
    rstd = jax.lax.rsqrt(var + EPS)
    scale = gamma_row * rstd
    shift = beta_row - mean * scale
    return scale, shift


def init_resblock_params(key, in_channel, out_channel, project):
    ks = jax.random.split(key, 12)

    def nrm(k, shape, scale=0.1):
        return scale * jax.random.normal(k, shape, dtype=jnp.float32)

    params = dict(
        w1=nrm(ks[0], (3, 3, in_channel, out_channel)),   # HWIO
        b1=nrm(ks[1], (out_channel,)),
        g1=1.0 + nrm(ks[2], (out_channel,)),
        be1=nrm(ks[3], (out_channel,)),
        w2=nrm(ks[4], (3, 3, out_channel, out_channel)),
        b2=nrm(ks[5], (out_channel,)),
        g2=1.0 + nrm(ks[6], (out_channel,)),
        be2=nrm(ks[7], (out_channel,)),
    )
    if project:
        params.update(
            ws=nrm(ks[8], (1, 1, in_channel, out_channel)),
            bs=nrm(ks[9], (out_channel,)),
            gs=1.0 + nrm(ks[10], (out_channel,)),
            bes=nrm(ks[11], (out_channel,)),
        )
    return params


def resblock_forward(x_nchw, params, *, stride, project):
    x = jnp.transpose(x_nchw, (0, 2, 3, 1)).astype(jnp.float32)   # NHWC
    N, H, W, Cin = x.shape
    Cout = params["w1"].shape[-1]
    Cp = _ceil_to(Cout, LANE)            # lane-dense channel axis

    # ---- conv1 (+ BN1 stats) ------------------------------------------------
    # TODO(synk): the im2col patch slabs (p1/p2) are still materialized in HBM
    # by JAX glue; folding the 9 taps into in-kernel shifted matmuls would
    # remove the remaining read amplification.
    p1, Ho, Wo = _im2col(x, 3, stride, 1)            # (M, 9*Cin)
    M = N * Ho * Wo
    tm = min(TM_TARGET, _ceil_to(M, SUB))
    Mp = _ceil_to(M, tm)                 # padded rows are all-zero -> stats exact

    K1 = 9 * Cin
    K1p = _ceil_to(K1, SUB)
    p1p = _pad2d(p1, Mp, K1p).astype(MXU_DTYPE)
    w1m = _pad2d(params["w1"].reshape(K1, Cout), K1p, Cp).astype(MXU_DTYPE)
    # Conv biases (b1/b2/bs) are dropped: a per-channel bias before
    # training-mode BN is cancelled exactly by the mean subtraction.
    y1, s1, q1 = _conv_matmul_stats(p1p, w1m, tm)

    sc1, sh1 = _bn_scale_shift(s1, q1, M,
                               _pad_row(params["g1"], Cp),
                               _pad_row(params["be1"], Cp))
    h1 = _bn_relu_apply(y1, sc1, sh1, tm)            # (Mp, Cp) f32

    # ---- conv2 (+ BN2 stats) and shortcut -----------------------------------
    h1_nhwc = h1[:M, :Cout].reshape(N, Ho, Wo, Cout)
    p2, _, _ = _im2col(h1_nhwc, 3, 1, 1)             # (M, 9*Cout)
    K2 = 9 * Cout
    K2p = _ceil_to(K2, SUB)
    p2p = _pad2d(p2, Mp, K2p).astype(MXU_DTYPE)
    w2m = _pad2d(params["w2"].reshape(K2, Cout), K2p, Cp).astype(MXU_DTYPE)
    g2 = _pad_row(params["g2"], Cp)
    be2 = _pad_row(params["be2"], Cp)

    if project:
        # Projection shortcut: 1x1 / stride conv + its own BN, fused into the
        # same tiled pass as conv2.
        xs = x[:, ::stride, ::stride, :].reshape(M, Cin)
        Ksp = _ceil_to(Cin, SUB)
        xsp = _pad2d(xs, Mp, Ksp).astype(MXU_DTYPE)
        wsm = _pad2d(params["ws"].reshape(Cin, Cout), Ksp, Cp).astype(MXU_DTYPE)
        y2, ys, s2, q2, ss, qs = _conv_proj_matmul_stats(p2p, w2m, xsp, wsm, tm)
        sc2, sh2 = _bn_scale_shift(s2, q2, M, g2, be2)
        scs, shs = _bn_scale_shift(ss, qs, M,
                                   _pad_row(params["gs"], Cp),
                                   _pad_row(params["bes"], Cp))
        out2 = _bn_add_bn_relu_apply(y2, ys, sc2, sh2, scs, shs, tm)
    else:
        assert Cin == Cout and stride == 1, \
            "identity shortcut requires Cin == Cout and stride == 1"
        y2, s2, q2 = _conv_matmul_stats(p2p, w2m, tm)
        sc2, sh2 = _bn_scale_shift(s2, q2, M, g2, be2)
        res = _pad2d(x.reshape(M, Cin), Mp, Cp)      # identity residual, f32
        out2 = _bn_add_res_relu_apply(y2, res, sc2, sh2, tm)

    out = out2[:M, :Cout].reshape(N, Ho, Wo, Cout)
    return jnp.transpose(out, (0, 3, 1, 2))          # back to NCHW


# ---------------------------------------------------------------------------
# Pure-JAX reference (faithful to the PyTorch module, incl. conv biases)
# ---------------------------------------------------------------------------
def resblock_reference(x_nchw, params, *, stride, project):
    def conv(x, w, b, s, pad):
        y = jax.lax.conv_general_dilated(
            x, w, window_strides=(s, s), padding=((pad, pad), (pad, pad)),
            dimension_numbers=("NCHW", "HWIO", "NCHW"))
        return y + b.reshape(1, -1, 1, 1)

    def bn(y, g, be):
        mean = y.mean(axis=(0, 2, 3), keepdims=True)
        var = jnp.mean(jnp.square(y - mean), axis=(0, 2, 3), keepdims=True)
        return (y - mean) / jnp.sqrt(var + EPS) * g.reshape(1, -1, 1, 1) \
            + be.reshape(1, -1, 1, 1)

    o = jax.nn.relu(bn(conv(x_nchw, params["w1"], params["b1"], stride, 1),
                       params["g1"], params["be1"]))
    o = bn(conv(o, params["w2"], params["b2"], 1, 1), params["g2"], params["be2"])
    if project:
        sc = bn(conv(x_nchw, params["ws"], params["bs"], stride, 0),
                params["gs"], params["bes"])
    else:
        sc = x_nchw
    return jax.nn.relu(o + sc)


if __name__ == "__main__":
    key = jax.random.PRNGKey(0)
    configs = [
        # (inChannel, outChannel, isFirstBlock)
        (4, 8, False),   # stride 2, projection (1x1 conv + BN) shortcut
        (8, 8, True),    # stride 1, identity shortcut
    ]
    for cin, cout, first in configs:
        stride = 1 if first else 2
        project = cin != cout
        key, kx, kp = jax.random.split(key, 3)
        x = jax.random.normal(kx, (2, cin, 16, 16), dtype=jnp.float32)  # NCHW
        params = init_resblock_params(kp, cin, cout, project)

        out = jax.block_until_ready(
            resblock_forward(x, params, stride=stride, project=project))
        ref = jax.block_until_ready(
            resblock_reference(x, params, stride=stride, project=project))

        assert out.shape == (2, cout, 16 // stride, 16 // stride), out.shape
        # bf16 MXU operands -> slightly looser tolerance than pure f32.
        np.testing.assert_allclose(np.asarray(out), np.asarray(ref),
                                   rtol=3e-2, atol=3e-2)
    print("KERNEL_OK")
</pallas_src>

<mosaic_0001>
module attributes {stable_mosaic.version = 11 : i64} {
  func.func @_matmul_stats_kernel(%arg0: i32, %arg1: memref<128x40xbf16, #tpu.memory_space<vmem>>, %arg2: memref<40x128xbf16, #tpu.memory_space<vmem>>, %arg3: memref<128x128xf32, #tpu.memory_space<vmem>>, %arg4: memref<1x128xf32, #tpu.memory_space<vmem>>, %arg5: memref<1x128xf32, #tpu.memory_space<vmem>>) attributes {dimension_semantics = [#tpu.dimension_semantics<arbitrary>], iteration_bounds = array<i64: 1>, scalar_prefetch = 0 : i64, scratch_operands = 0 : i64, tpu.core_type = #tpu.core_type<tc>, window_params = [{transform_indices = @transform_0, window_bounds = array<i64: 128, 40>}, {pipeline_mode = #tpu.pipeline_mode<synchronous>, transform_indices = @transform_1, window_bounds = array<i64: 40, 128>}, {transform_indices = @transform_2, window_bounds = array<i64: 128, 128>}, {pipeline_mode = #tpu.pipeline_mode<synchronous>, transform_indices = @transform_3, window_bounds = array<i64: 1, 128>}, {pipeline_mode = #tpu.pipeline_mode<synchronous>, transform_indices = @transform_4, window_bounds = array<i64: 1, 128>}]} {
    %c0_i32 = arith.constant 0 : i32
    %0 = arith.cmpi eq, %arg0, %c0_i32 : i32
    %1 = arith.extui %0 : i1 to i32
    %c0_i32_0 = arith.constant 0 : i32
    %2 = arith.cmpi ne, %1, %c0_i32_0 : i32
    scf.if %2 {
      %cst_16 = arith.constant 0.000000e+00 : f32
      %18 = vector.broadcast %cst_16 : f32 to vector<1x128xf32>
      %c0_17 = arith.constant 0 : index
      %c0_18 = arith.constant 0 : index
      %19 = vector.load %arg4[%c0_17, %c0_18] : memref<1x128xf32, #tpu.memory_space<vmem>>, vector<1x128xf32>
      tpu.vector_store %arg4[%c0_17, %c0_18], %18 {strides = array<i32>} : memref<1x128xf32, #tpu.memory_space<vmem>>, vector<1x128xf32>,
      %cst_19 = arith.constant 0.000000e+00 : f32
      %20 = vector.broadcast %cst_19 : f32 to vector<1x128xf32>
      %c0_20 = arith.constant 0 : index
      %c0_21 = arith.constant 0 : index
      %21 = vector.load %arg5[%c0_20, %c0_21] : memref<1x128xf32, #tpu.memory_space<vmem>>, vector<1x128xf32>
      tpu.vector_store %arg5[%c0_20, %c0_21], %20 {strides = array<i32>} : memref<1x128xf32, #tpu.memory_space<vmem>>, vector<1x128xf32>,
    } else {
    }
    %c0 = arith.constant 0 : index
    %c0_1 = arith.constant 0 : index
    %3 = vector.load %arg1[%c0, %c0_1] : memref<128x40xbf16, #tpu.memory_space<vmem>>, vector<128x40xbf16>
    %c0_2 = arith.constant 0 : index
    %c0_3 = arith.constant 0 : index
    %4 = vector.load %arg2[%c0_2, %c0_3] : memref<40x128xbf16, #tpu.memory_space<vmem>>, vector<40x128xbf16>
    %cst = arith.constant dense<0.000000e+00> : vector<128x128xf32>
    %5 = tpu.matmul %3, %4, %cst {dimension_numbers = #tpu.dot_dimension_numbers<[1], [0], [0], [1], [0, 0, 1, 1], [], []>} : vector<128x40xbf16>, vector<40x128xbf16>, vector<128x128xf32> -> vector<128x128xf32>
    %c0_4 = arith.constant 0 : index
    %c0_5 = arith.constant 0 : index
    %6 = vector.load %arg3[%c0_4, %c0_5] : memref<128x128xf32, #tpu.memory_space<vmem>>, vector<128x128xf32>
    tpu.vector_store %arg3[%c0_4, %c0_5], %5 {strides = array<i32>} : memref<128x128xf32, #tpu.memory_space<vmem>>, vector<128x128xf32>,
    %c0_6 = arith.constant 0 : index
    %c0_7 = arith.constant 0 : index
    %7 = vector.load %arg4[%c0_6, %c0_7] : memref<1x128xf32, #tpu.memory_space<vmem>>, vector<1x128xf32>
    %cst_8 = arith.constant dense<0.000000e+00> : vector<128xf32>
    %8 = vector.multi_reduction <add>, %5, %cst_8 [0] : vector<128x128xf32> to vector<128xf32>
    %9 = vector.shape_cast %8 : vector<128xf32> to vector<1x128xf32>
    %10 = arith.addf %7, %9 : vector<1x128xf32>
    %c0_9 = arith.constant 0 : index
    %c0_10 = arith.constant 0 : index
    %11 = vector.load %arg4[%c0_9, %c0_10] : memref<1x128xf32, #tpu.memory_space<vmem>>, vector<1x128xf32>
    tpu.vector_store %arg4[%c0_9, %c0_10], %10 {strides = array<i32>} : memref<1x128xf32, #tpu.memory_space<vmem>>, vector<1x128xf32>,
    %c0_11 = arith.constant 0 : index
    %c0_12 = arith.constant 0 : index
    %12 = vector.load %arg5[%c0_11, %c0_12] : memref<1x128xf32, #tpu.memory_space<vmem>>, vector<1x128xf32>
    %13 = arith.mulf %5, %5 : vector<128x128xf32>
    %cst_13 = arith.constant dense<0.000000e+00> : vector<128xf32>
    %14 = vector.multi_reduction <add>, %13, %cst_13 [0] : vector<128x128xf32> to vector<128xf32>
    %15 = vector.shape_cast %14 : vector<128xf32> to vector<1x128xf32>
    %16 = arith.addf %12, %15 : vector<1x128xf32>
    %c0_14 = arith.constant 0 : index
    %c0_15 = arith.constant 0 : index
    %17 = vector.load %arg5[%c0_14, %c0_15] : memref<1x128xf32, #tpu.memory_space<vmem>>, vector<1x128xf32>
    tpu.vector_store %arg5[%c0_14, %c0_15], %16 {strides = array<i32>} : memref<1x128xf32, #tpu.memory_space<vmem>>, vector<1x128xf32>,
    return
  }
  func.func @transform_0(%arg0: i32) -> (i32, i32) {
    %c0_i32 = arith.constant 0 : i32
    %c0_i32_0 = arith.constant 0 : i32
    return %arg0, %c0_i32 : i32, i32
  }
  func.func @transform_1(%arg0: i32) -> (i32, i32) {
    %c0_i32 = arith.constant 0 : i32
    %c0_i32_0 = arith.constant 0 : i32
    %c0_i32_1 = arith.constant 0 : i32
    return %c0_i32, %c0_i32_0 : i32, i32
  }
  func.func @transform_2(%arg0: i32) -> (i32, i32) {
    %c0_i32 = arith.constant 0 : i32
    %c0_i32_0 = arith.constant 0 : i32
    return %arg0, %c0_i32 : i32, i32
  }
  func.func @transform_3(%arg0: i32) -> (i32, i32) {
    %c0_i32 = arith.constant 0 : i32
    %c0_i32_0 = arith.constant 0 : i32
    %c0_i32_1 = arith.constant 0 : i32
    return %c0_i32, %c0_i32_0 : i32, i32
  }
  func.func @transform_4(%arg0: i32) -> (i32, i32) {
    %c0_i32 = arith.constant 0 : i32
    %c0_i32_0 = arith.constant 0 : i32
    %c0_i32_1 = arith.constant 0 : i32
    return %c0_i32, %c0_i32_0 : i32, i32
  }
}

</mosaic_0001>

<llo_original>
// kernel: tpu_custom_call.1
$region0: #{tpu_custom_call.1}
  #allocation0 [shape = 'u32[]', space=smem, size = 0x4, offset = 0x4, fixed_abs, tag = 'smem constant byte address 0x4 - core index']
  #allocation1 [shape = 'u32[72,128]{1,0:T(1,128)}', space=vmem, size = 0x9000, scoped, tag = 'internal scratch']
  %s0 = inlined_call_operand.vmem [shape: bf16[128,40], index: 0, kind: input, shape index: {}]
  %s1 = inlined_call_operand.vmem [shape: bf16[40,128], index: 1, kind: input, shape index: {}]
  %s2 = inlined_call_operand.hbm [shape: f32[128,128], index: 2, kind: output, shape index: {0}]
  %s3 = inlined_call_operand.hbm [shape: f32[1,128], index: 3, kind: output, shape index: {1}]
  %s4 = inlined_call_operand.hbm [shape: f32[1,128], index: 4, kind: output, shape index: {2}]
  %5 = xla_tuple %s2, %s3, %s4
  %s6 = sld [smem:[#allocation0]]
  $region38: #{tpu_custom_call.1} parent=0
    _
  %s8 = ssub.s32 1, %s6
  %s9 = scalar_select 0, %s8, %s6
  $region1: #{tpu_custom_call.1} parent=0
    #allocation2 [shape = 'u8[65536]{0}', space=vmem, size = 0x10000, scoped, tag = 'output window, operand 0, single buffered']
    #allocation3 [shape = 's32[1]{0}', space=sflag, size = 0x4, scoped, tag = 'scoped memory for tpu_custom_call.1']
    #allocation4 [shape = 'u8[512]{0}', space=vmem, size = 0x400, scoped, tag = 'output window, operand 1, single buffered']
    #allocation5 [shape = 's32[1]{0}', space=sflag, size = 0x4, scoped, tag = 'scoped memory for tpu_custom_call.1']
    #allocation6 [shape = 'u8[512]{0}', space=vmem, size = 0x400, scoped, tag = 'output window, operand 2, single buffered']
    %10 = vsyncpa [#allocation3], 0
    %11 = vsyncpa [#allocation5], 0
    // Predicated region
    $region2: #{tpu_custom_call.1} parent=1 // pred_check
      _
    $region3: #{tpu_custom_call.1} parent=1 // pred_check_branch
      %13 = sbr.rel (0) target = $region5
    $region4: #{tpu_custom_call.1} parent=1 // pred_region
      _
    $region5: #{tpu_custom_call.1} parent=1 // pred_fallthru
      _
    // Predicated region
    $region6: #{tpu_custom_call.1} parent=1 // pred_check
      _
    $region7: #{tpu_custom_call.1} parent=1 // pred_check_branch
      %15 = sbr.rel (0) target = $region9
    $region8: #{tpu_custom_call.1} parent=1 // pred_region
      _
    $region9: #{tpu_custom_call.1} parent=1 // pred_fallthru
      _
    %p17 = scmp.eq.s32.totalorder 0, 0
    // Predicated region
    $region10: #{tpu_custom_call.1} parent=1 // pred_check
      %p18 = pneg %p17
    $region11: #{tpu_custom_call.1} parent=1 // pred_check_branch
      %20 = sbr.rel (%p18) target = $region13
    $region12: #{tpu_custom_call.1} parent=1 // pred_region
      %21 = vst [vmem:[#allocation4] sm:$0x1] 0.0
      %22 = vst [vmem:[#allocation6] sm:$0x1] 0.0
    $region13: #{tpu_custom_call.1} parent=1 // pred_fallthru
      _
    %v23 = vld [vmem:[%s0] sm:$0xf]
    %v24 = vld [vmem:[%s0 + $0x4] sm:$0xf]
    %v25 = vld [vmem:[%s0 + $0x8] sm:$0xf]
    %v26 = vld [vmem:[%s0 + $0xc] sm:$0xf]
    %v27 = vld [vmem:[%s0 + $0x10] sm:$0xf]
    %v28 = vld [vmem:[%s0 + $0x14] sm:$0xf]
    %v29 = vld [vmem:[%s0 + $0x18] sm:$0xf]
    %v30 = vld [vmem:[%s0 + $0x1c] sm:$0xf]
    %v31 = vld [vmem:[%s0 + $0x20] sm:$0xf]
    %v32 = vld [vmem:[%s0 + $0x24] sm:$0xf]
    %v33 = vld [vmem:[%s0 + $0x28] sm:$0xf]
    %v34 = vld [vmem:[%s0 + $0x2c] sm:$0xf]
    %v35 = vld [vmem:[%s0 + $0x30] sm:$0xf]
    %v36 = vld [vmem:[%s0 + $0x34] sm:$0xf]
    %v37 = vld [vmem:[%s0 + $0x38] sm:$0xf]
    %v38 = vld [vmem:[%s0 + $0x3c] sm:$0xf]
    %v39 = vld [vmem:[%s1] sm:$0xf]
    %v40 = vld [vmem:[%s1 + $0x4] sm:$0xf]
    %v41 = vld [vmem:[%s1 + $0x8] sm:$0xf]
    %v42 = vld [vmem:[%s1 + $0xc] sm:$0xf]
    %v43 = vld [vmem:[%s1 + $0x10] sm:$0xf]
    %v60 = vunpack.c.l.b16 %v23
    %v61 = vunpack.c.l.b16 %v24
    %v62 = vunpack.c.l.b16 %v25
    %v63 = vunpack.c.l.b16 %v26
    %v64 = vunpack.c.l.b16 %v27
    %v65 = vunpack.c.l.b16 %v28
    %v66 = vunpack.c.l.b16 %v29
    %v67 = vunpack.c.l.b16 %v30
    %v68 = vunpack.c.l.b16 %v31
    %v69 = vunpack.c.l.b16 %v32
    %v70 = vunpack.c.l.b16 %v33
    %v71 = vunpack.c.l.b16 %v34
    %v72 = vunpack.c.l.b16 %v35
    %v73 = vunpack.c.l.b16 %v36
    %v74 = vunpack.c.l.b16 %v37
    %v75 = vunpack.c.l.b16 %v38
    %v76 = vpack.c.b16 %v61, %v60
    %v77 = vpack.c.b16 %v63, %v62
    %v78 = vpack.c.b16 %v65, %v64
    %v79 = vpack.c.b16 %v67, %v66
    %v80 = vpack.c.b16 %v69, %v68
    %v81 = vpack.c.b16 %v71, %v70
    %v82 = vpack.c.b16 %v73, %v72
    %v83 = vpack.c.b16 %v75, %v74
    %v89 = vunpack.c.l.b16 %v39
    %v90 = vunpack.c.l.b16 %v40
    %v91 = vunpack.c.l.b16 %v41
    %v92 = vunpack.c.l.b16 %v42
    %v93 = vunpack.c.l.b16 %v43
    %v94 = vpack.c.b16 %v90, %v89
    %v95 = vpack.c.b16 %v92, %v91
    %v96 = vpack.c.b16 %v93, %v93
    %vm99 = vcmask 326656
    %v101 = vsel %vm99, %v76, 0
    %v104 = vsel %vm99, %v77, 0
    %v107 = vsel %vm99, %v78, 0
    %v110 = vsel %vm99, %v79, 0
    %v113 = vsel %vm99, %v80, 0
    %v116 = vsel %vm99, %v81, 0
    %v119 = vsel %vm99, %v82, 0
    %v122 = vsel %vm99, %v83, 0
    %vm124 = vcmask 1043456
    %v126 = vsel %vm124, %v96, 0
    %128 = vmatpush.bf16.msra.mxu0 0
    %129 = vmatpush.bf16.msra.mxu0 0
    %130 = vmatpush.bf16.msra.mxu0 0
    %131 = vmatpush.bf16.msra.mxu0 0
    %132 = vmatpush.bf16.msra.mxu0 0
    %133 = vmatpush.bf16.msra.mxu0 %v126
    %134 = vmatpush.bf16.msra.mxu0 %v95
    %135 = vmatpush.bf16.msra.mxu0 %v94
    %136 = vmatmul.bf16.gmra.mxu0 %v101
    %v137 = vpop.f32.mrf.mxu0
    %v138 = vadd.f32 0.0, %v137
    %v139 = vpop.f32.mrf.mxu0
    %v140 = vadd.f32 0.0, %v139
    %141 = vmatmul.bf16.gmra.mxu0 %v104
    %v142 = vpop.f32.mrf.mxu0
    %v143 = vadd.f32 0.0, %v142
    %v144 = vpop.f32.mrf.mxu0
    %v145 = vadd.f32 0.0, %v144
    %146 = vmatmul.bf16.gmra.mxu0 %v107
    %v147 = vpop.f32.mrf.mxu0
    %v148 = vadd.f32 0.0, %v147
    %v149 = vpop.f32.mrf.mxu0
    %v150 = vadd.f32 0.0, %v149
    %151 = vmatmul.bf16.gmra.mxu0 %v110
    %v152 = vpop.f32.mrf.mxu0
    %v153 = vadd.f32 0.0, %v152
    %v154 = vpop.f32.mrf.mxu0
    %v155 = vadd.f32 0.0, %v154
    %156 = vmatmul.bf16.gmra.mxu0 %v113
    %v157 = vpop.f32.mrf.mxu0
    %v158 = vadd.f32 0.0, %v157
    %v159 = vpop.f32.mrf.mxu0
    %v160 = vadd.f32 0.0, %v159
    %161 = vmatmul.bf16.gmra.mxu0 %v116
    %v162 = vpop.f32.mrf.mxu0
    %v163 = vadd.f32 0.0, %v162
    %v164 = vpop.f32.mrf.mxu0
    %v165 = vadd.f32 0.0, %v164
    %166 = vmatmul.bf16.gmra.mxu0 %v119
    %v167 = vpop.f32.mrf.mxu0
    %v168 = vadd.f32 0.0, %v167
    %v169 = vpop.f32.mrf.mxu0
    %v170 = vadd.f32 0.0, %v169
    %171 = vmatmul.bf16.gmra.mxu0 %v122
    %v172 = vpop.f32.mrf.mxu0
    %v173 = vadd.f32 0.0, %v172
    %v174 = vpop.f32.mrf.mxu0
    %v175 = vadd.f32 0.0, %v174
    %176 = vdwg.mxu0
    %177 = vst [vmem:[#allocation2] sm:$0xff] %v138
    %178 = vst [vmem:[#allocation2 + $0x8] sm:$0xff] %v140
    %179 = vst [vmem:[#allocation2 + $0x10] sm:$0xff] %v143
    %180 = vst [vmem:[#allocation2 + $0x18] sm:$0xff] %v145
    %181 = vst [vmem:[#allocation2 + $0x20] sm:$0xff] %v148
    %182 = vst [vmem:[#allocation2 + $0x28] sm:$0xff] %v150
    %183 = vst [vmem:[#allocation2 + $0x30] sm:$0xff] %v153
    %184 = vst [vmem:[#allocation2 + $0x38] sm:$0xff] %v155
    %185 = vst [vmem:[#allocation2 + $0x40] sm:$0xff] %v158
    %186 = vst [vmem:[#allocation2 + $0x48] sm:$0xff] %v160
    %187 = vst [vmem:[#allocation2 + $0x50] sm:$0xff] %v163
    %188 = vst [vmem:[#allocation2 + $0x58] sm:$0xff] %v165
    %189 = vst [vmem:[#allocation2 + $0x60] sm:$0xff] %v168
    %190 = vst [vmem:[#allocation2 + $0x68] sm:$0xff] %v170
    %191 = vst [vmem:[#allocation2 + $0x70] sm:$0xff] %v173
    %192 = vst [vmem:[#allocation2 + $0x78] sm:$0xff] %v175
    %v193 = vld [vmem:[#allocation4] sm:$0x1]
    %v194 = vadd.f32 %v138, %v140
    %v195 = vadd.f32 %v194, %v143
    %v196 = vadd.f32 %v195, %v145
    %v197 = vadd.f32 %v196, %v148
    %v198 = vadd.f32 %v197, %v150
    %v199 = vadd.f32 %v198, %v153
    %v200 = vadd.f32 %v199, %v155
    %v201 = vadd.f32 %v200, %v158
    %v202 = vadd.f32 %v201, %v160
    %v203 = vadd.f32 %v202, %v163
    %v204 = vadd.f32 %v203, %v165
    %v205 = vadd.f32 %v204, %v168
    %v206 = vadd.f32 %v205, %v170
    %v207 = vadd.f32 %v206, %v173
    %v208 = vadd.f32 %v207, %v175
    %v209 = vrot.slane %v208, 4
    %v210 = vadd.f32 %v208, %v209
    %v211 = vrot.slane %v210, 2
    %v212 = vadd.f32 %v210, %v211
    %v213 = vrot.slane %v212, 1
    %v214 = vadd.f32 %v212, %v213
    %v215 = vadd.f32 %v193, %v214
    %216 = vst [vmem:[#allocation4] sm:$0x1] %v215
    %v217 = vld [vmem:[#allocation6] sm:$0x1]
    %v218 = vmul.f32 %v138, %v138
    %v219 = vmul.f32 %v140, %v140
    %v220 = vmul.f32 %v143, %v143
    %v221 = vmul.f32 %v145, %v145
    %v222 = vmul.f32 %v148, %v148
    %v223 = vmul.f32 %v150, %v150
    %v224 = vmul.f32 %v153, %v153
    %v225 = vmul.f32 %v155, %v155
    %v226 = vmul.f32 %v158, %v158
    %v227 = vmul.f32 %v160, %v160
    %v228 = vmul.f32 %v163, %v163
    %v229 = vmul.f32 %v165, %v165
    %v230 = vmul.f32 %v168, %v168
    %v231 = vmul.f32 %v170, %v170
    %v232 = vmul.f32 %v173, %v173
    %v233 = vmul.f32 %v175, %v175
    %v234 = vadd.f32 %v218, %v219
    %v235 = vadd.f32 %v234, %v220
    %v236 = vadd.f32 %v235, %v221
    %v237 = vadd.f32 %v236, %v222
    %v238 = vadd.f32 %v237, %v223
    %v239 = vadd.f32 %v238, %v224
    %v240 = vadd.f32 %v239, %v225
    %v241 = vadd.f32 %v240, %v226
    %v242 = vadd.f32 %v241, %v227
    %v243 = vadd.f32 %v242, %v228
    %v244 = vadd.f32 %v243, %v229
    %v245 = vadd.f32 %v244, %v230
    %v246 = vadd.f32 %v245, %v231
    %v247 = vadd.f32 %v246, %v232
    %v248 = vadd.f32 %v247, %v233
    %v249 = vrot.slane %v248, 4
    %v250 = vadd.f32 %v248, %v249
    %v251 = vrot.slane %v250, 2
    %v252 = vadd.f32 %v250, %v251
    %v253 = vrot.slane %v252, 1
    %v254 = vadd.f32 %v252, %v253
    %v255 = vadd.f32 %v217, %v254
    %256 = vst [vmem:[#allocation6] sm:$0x1] %v255
    // Predicated region
    $region14: #{tpu_custom_call.1} parent=1 // pred_check
      _
    $region15: #{tpu_custom_call.1} parent=1 // pred_check_branch
      %258 = sbr.rel (0) target = $region17
    $region16: #{tpu_custom_call.1} parent=1 // pred_region
      %260 = vsyncadd [#allocation3], 0
      %s261 = sshll.u32 [#allocation2], 4
      %s262 = int_to_ptr.vmem [resolvable:$true] %s261
      %s263 = sshll.u32 %s2, 4
      %s264 = int_to_ptr.hbm [resolvable:$true] %s263
      %269 = dma.vmem_to_hbm [thread:$0]  %s262, 2048, %s264, [#allocation3], 128, 128, 8
    $region17: #{tpu_custom_call.1} parent=1 // pred_fallthru
      _
    // Predicated region
    $region18: #{tpu_custom_call.1} parent=1 // pred_check
      _
    $region19: #{tpu_custom_call.1} parent=1 // pred_check_branch
      %271 = sbr.rel (0) target = $region21
    $region20: #{tpu_custom_call.1} parent=1 // pred_region
      %273 = vsyncadd [#allocation5], 0
      %s275 = sshll.u32 [#allocation4], 4
      %s276 = int_to_ptr.vmem [resolvable:$true] %s275
      %s277 = sshll.u32 %s3, 4
      %s278 = int_to_ptr.hbm [resolvable:$true] %s277
      %280 = dma.vmem_to_hbm [thread:$0]  %s276, 16, %s278, [#allocation5]
    $region21: #{tpu_custom_call.1} parent=1 // pred_fallthru
      _
    // Predicated region
    $region22: #{tpu_custom_call.1} parent=1 // pred_check
      _
    $region23: #{tpu_custom_call.1} parent=1 // pred_check_branch
      %282 = sbr.rel (0) target = $region25
    $region24: #{tpu_custom_call.1} parent=1 // pred_region
      %284 = vsyncadd [#allocation5], 0
      %s286 = sshll.u32 [#allocation6], 4
      %s287 = int_to_ptr.vmem [resolvable:$true] %s286
      %s288 = sshll.u32 %s4, 4
      %s289 = int_to_ptr.hbm [resolvable:$true] %s288
      %291 = dma.vmem_to_hbm [thread:$0]  %s287, 16, %s289, [#allocation5]
    $region25: #{tpu_custom_call.1} parent=1 // pred_fallthru
      _
    // Predicated region
    $region26: #{tpu_custom_call.1} parent=1 // pred_check
      _
    $region27: #{tpu_custom_call.1} parent=1 // pred_check_branch
      %293 = sbr.rel (0) target = $region29
    $region28: #{tpu_custom_call.1} parent=1 // pred_region
      %295 = dma.done [#allocation3], 2048
    $region29: #{tpu_custom_call.1} parent=1 // pred_fallthru
      _
    // Predicated region
    $region30: #{tpu_custom_call.1} parent=1 // pred_check
      _
    $region31: #{tpu_custom_call.1} parent=1 // pred_check_branch
      %297 = sbr.rel (0) target = $region33
    $region32: #{tpu_custom_call.1} parent=1 // pred_region
      %299 = dma.done [#allocation5], 16
    $region33: #{tpu_custom_call.1} parent=1 // pred_fallthru
      _
    // Predicated region
    $region34: #{tpu_custom_call.1} parent=1 // pred_check
      _
    $region35: #{tpu_custom_call.1} parent=1 // pred_check_branch
      %301 = sbr.rel (0) target = $region37
    $region36: #{tpu_custom_call.1} parent=1 // pred_region
      %303 = dma.done [#allocation5], 16
    $region37: #{tpu_custom_call.1} parent=1 // pred_fallthru
      _
    %304 = vsyncpa [#allocation3], 1
    %305 = vsyncpa [#allocation5], 1

</llo_original>
